<compile_context>
chip_gen: v7x
topology: tpu7x:2x2x1
jax: 0.10.0
libtpu: 0.0.40
codegen_flags: <defaults>
</compile_context>

<pallas_src>
import jax
import jax.numpy as jnp
from jax.experimental import pallas as pl
from jax.experimental.pallas import tpu as pltpu


# ----------------------------- Pallas kernel --------------------------------

def ffn_kernel(x_ref, w1t_ref, b1_ref, w2t_ref, b2_ref, o_ref):
    # x_ref:   (nb, Cin, T) f32     w1t_ref: (Chid, Cin)  bf16   b1_ref: (Chid, 1) f32
    # w2t_ref: (Cout, Chid) bf16    b2_ref:  (Cout, 1)    f32    o_ref:  (nb, Cout, T) f32
    w1t = w1t_ref[...]
    w2t = w2t_ref[...]
    b1 = b1_ref[...]
    b2 = b2_ref[...]
    for i in range(x_ref.shape[0]):          # nb is small and static
        x = x_ref[i]                         # (Cin, T), f32 (kept for the residual)
        # fc1 (1x1 conv + folded BN) -> ReLU; bf16 operands, f32 MXU accumulation.
        h = jnp.dot(w1t, x.astype(w1t.dtype), preferred_element_type=jnp.float32)
        h = jnp.maximum(h + b1, 0.0)
        # fc2 (1x1 conv + folded BN); bf16 operands, f32 accumulation.
        y = jnp.dot(w2t, h.astype(w2t.dtype), preferred_element_type=jnp.float32)
        y = y + b2
        # drop_path(0.0) == Identity -> residual add (f32 epilogue).
        o_ref[i] = (y + x.astype(jnp.float32)).astype(o_ref.dtype)


# ------------------------------ wrapper --------------------------------------

def _vmem_capacity_bytes():
    try:
        return int(pltpu.get_tpu_info().vmem_capacity_bytes)
    except Exception:
        return 64 * 2 ** 20      # v7x per-TensorCore VMEM: the safe lower bound


def _vmem_needed(nb, thw, cin, chid, cout, x_itemsize, w_itemsize):
    io_tiles = 2 * nb * (cin + cout) * thw * x_itemsize             # double-buffered x/out
    weights = (cin * chid + chid * cout) * w_itemsize + (chid + cout) * 4  # single-buffered
    inter = nb * (chid + cout) * thw * 4                            # in-kernel f32 h / y
    return io_tiles + weights + inter + (4 << 20)                   # + Mosaic scratch margin


def ffn_pallas(x_nchw, w1, b1, w2, b2, *, matmul_dtype=jnp.bfloat16):
    """x_nchw: (B, Cin, H, W); w1: (Cin, Chid); w2: (Chid, Cout=Cin); BN pre-folded."""
    B, Cin, H, W = x_nchw.shape
    Chid = w1.shape[1]
    Cout = w2.shape[1]
    assert Cout == Cin, "residual requires out_features == in_features"
    HW = H * W

    x_itemsize = x_nchw.dtype.itemsize
    w_itemsize = jnp.dtype(matmul_dtype).itemsize

    # Generation-aware VMEM budget with headroom for Mosaic internal scratch:
    # v7x (64 MiB/TC) -> ~50 MiB, v5e/v6e (128 MiB) -> 100 MiB.
    vmem_cap = _vmem_capacity_bytes()
    budget = min(int(0.78 * vmem_cap), 100 * 2 ** 20)

    # Spatial tiling / batch packing.
    thw_target = 2048 if budget >= 80 * 2 ** 20 else 1024
    if HW >= thw_target:
        thw, nb = thw_target, 1
    else:
        thw = HW
        nb = max(1, min(B, thw_target // max(HW, 1)))
        while B % nb:            # prefer whole batch blocks (clipping handles the rest)
            nb -= 1

    # Shrink tiles until the VMEM estimate (incl. f32 intermediates) fits the budget.
    while _vmem_needed(nb, thw, Cin, Chid, Cout, x_itemsize, w_itemsize) > budget:
        if nb > 1:
            nb = max(1, nb // 2)
        elif thw > 128:
            thw = max(128, (thw // 2) // 128 * 128)
        else:
            break
    needed = _vmem_needed(nb, thw, Cin, Chid, Cout, x_itemsize, w_itemsize)
    vmem_limit = int(min(budget, max(int(1.25 * needed), 32 * 2 ** 20)))

    grid = (pl.cdiv(B, nb), pl.cdiv(HW, thw))

    # Free reshape (contiguous); NO transpose and NO pad of the activation.
    x3d = x_nchw.reshape(B, Cin, HW)

    # One-time glue on the folded parameters: matmul operands bf16, biases f32.
    w1t = jnp.transpose(w1).astype(matmul_dtype)       # (Chid, Cin)
    w2t = jnp.transpose(w2).astype(matmul_dtype)       # (Cout, Chid)
    b1c = b1.reshape(Chid, 1).astype(jnp.float32)
    b2c = b2.reshape(Cout, 1).astype(jnp.float32)
    # TODO(synk): for memory-bound production shapes, pass x itself as bf16 to
    # halve the dominant HBM read/write traffic (needs looser output tolerances).

    cost = pl.CostEstimate(
        flops=2 * B * HW * (Cin * Chid + Chid * Cout),
        transcendentals=0,
        bytes_accessed=int(B * HW * (Cin + Cout) * x_itemsize
                           + (Cin * Chid + Chid * Cout) * w_itemsize
                           + (Chid + Cout) * 4))

    def call(weight_pipeline_kw):
        return pl.pallas_call(
            ffn_kernel,
            out_shape=jax.ShapeDtypeStruct((B, Cout, HW), x_nchw.dtype),
            grid_spec=pltpu.PrefetchScalarGridSpec(
                num_scalar_prefetch=0,
                grid=grid,
                in_specs=[
                    pl.BlockSpec((nb, Cin, thw), lambda b, s: (b, 0, s)),
                    # Constant index_map -> VMEM-resident across the whole grid.
                    pl.BlockSpec((Chid, Cin), lambda b, s: (0, 0), **weight_pipeline_kw),
                    pl.BlockSpec((Chid, 1), lambda b, s: (0, 0), **weight_pipeline_kw),
                    pl.BlockSpec((Cout, Chid), lambda b, s: (0, 0), **weight_pipeline_kw),
                    pl.BlockSpec((Cout, 1), lambda b, s: (0, 0), **weight_pipeline_kw),
                ],
                out_specs=pl.BlockSpec((nb, Cout, thw), lambda b, s: (b, 0, s)),
            ),
            compiler_params=pltpu.CompilerParams(
                # TODO(synk): on v7x, use pltpu.CORE_PARALLEL on the leading axis if
                # plain "parallel" does not shard the grid across the 2 TensorCores.
                dimension_semantics=("parallel", "parallel"),
                vmem_limit_bytes=vmem_limit),
            cost_estimate=cost,
        )(x3d, w1t, b1c, w2t, b2c)

    try:
        # Single-buffer the constant weight/bias blocks (they never change).
        out3d = call(dict(pipeline_mode=pl.Buffered(1)))
    except Exception:
        # TODO(synk): Buffered(1) unsupported on this jax version; fall back to the
        # default double-buffered weight blocks (costs a little extra VMEM only).
        out3d = call({})

    return out3d.reshape(B, Cout, H, W)


# ------------------------- parameter construction ---------------------------

def fold_bn_into_conv(w, b, gamma, beta, mean, var, eps=1e-5):
    """Fold eval-mode BatchNorm into a preceding 1x1 conv (all in f32).

    w: (Cin, Cout) channels-last matmul weight, b: (Cout,).
    Returns (w_eff, b_eff) such that  BN(conv(x)) == x @ w_eff + b_eff.
    """
    scale = gamma / jnp.sqrt(var + eps)          # (Cout,)
    w_eff = w * scale[None, :]
    b_eff = (b - mean) * scale + beta
    return w_eff, b_eff


def make_ffn_params(key, in_features, hidden_features):
    out_features = in_features
    ks = jax.random.split(key, 10)
    # conv weights (PyTorch layout (Cout, Cin, 1, 1)) stored transposed as (Cin, Cout)
    w1 = jax.random.normal(ks[0], (in_features, hidden_features), jnp.float32) * 0.1
    b1 = jax.random.normal(ks[1], (hidden_features,), jnp.float32) * 0.1
    w2 = jax.random.normal(ks[2], (hidden_features, out_features), jnp.float32) * 0.1
    b2 = jax.random.normal(ks[3], (out_features,), jnp.float32) * 0.1
    # BN params (eval mode / running stats)
    g1 = 1.0 + 0.1 * jax.random.normal(ks[4], (hidden_features,), jnp.float32)
    be1 = 0.1 * jax.random.normal(ks[5], (hidden_features,), jnp.float32)
    m1 = 0.1 * jax.random.normal(ks[6], (hidden_features,), jnp.float32)
    v1 = jnp.abs(1.0 + 0.1 * jax.random.normal(ks[7], (hidden_features,), jnp.float32))
    g2 = 1.0 + 0.1 * jax.random.normal(ks[8], (out_features,), jnp.float32)
    be2 = 0.1 * jax.random.normal(ks[9], (out_features,), jnp.float32)
    m2 = jnp.zeros((out_features,), jnp.float32)
    v2 = jnp.ones((out_features,), jnp.float32)

    w1e, b1e = fold_bn_into_conv(w1, b1, g1, be1, m1, v1)
    w2e, b2e = fold_bn_into_conv(w2, b2, g2, be2, m2, v2)
    return w1e, b1e, w2e, b2e


# ------------------------------ reference -----------------------------------

def ffn_ref(x_nchw, w1, b1, w2, b2):
    # Pure-f32 reference: x (B, Cin, H, W), w1 (Cin, Chid), w2 (Chid, Cout).
    h = jnp.einsum('bchw,cd->bdhw', x_nchw, w1) + b1[None, :, None, None]
    h = jnp.maximum(h, 0.0)
    y = jnp.einsum('bchw,cd->bdhw', h, w2) + b2[None, :, None, None]
    return y + x_nchw


if __name__ == "__main__":
    key = jax.random.PRNGKey(0)
    kx, kp = jax.random.split(key)

    B, Cin, H, W = 2, 4, 16, 16
    hidden = 16   # FFN uses hidden = 4 * channels

    x = jax.random.normal(kx, (B, Cin, H, W), jnp.float32)
    w1, b1, w2, b2 = make_ffn_params(kp, Cin, hidden)

    out = jax.block_until_ready(ffn_pallas(x, w1, b1, w2, b2))
    ref = ffn_ref(x, w1, b1, w2, b2)

    assert out.shape == (B, Cin, H, W)
    # bf16 matmul operands with f32 accumulation/epilogue vs. a pure-f32 reference.
    assert jnp.allclose(out, ref, atol=2e-2, rtol=2e-2)
    print("KERNEL_OK")
</pallas_src>

<mosaic_0001>
module attributes {stable_mosaic.version = 11 : i64} {
  func.func @ffn_kernel(%arg0: i32, %arg1: i32, %arg2: memref<2x4x256xf32, #tpu.memory_space<vmem>>, %arg3: memref<16x4xbf16, #tpu.memory_space<vmem>>, %arg4: memref<16x1xf32, #tpu.memory_space<vmem>>, %arg5: memref<4x16xbf16, #tpu.memory_space<vmem>>, %arg6: memref<4x1xf32, #tpu.memory_space<vmem>>, %arg7: memref<2x4x256xf32, #tpu.memory_space<vmem>>) attributes {dimension_semantics = [#tpu.dimension_semantics<parallel>, #tpu.dimension_semantics<parallel>], iteration_bounds = array<i64: 1, 1>, scalar_prefetch = 0 : i64, scratch_operands = 0 : i64, tpu.core_type = #tpu.core_type<tc>, window_params = [{transform_indices = @transform_0, window_bounds = array<i64: 2, 4, 256>}, {pipeline_mode = #tpu.pipeline_mode<synchronous>, transform_indices = @transform_1, window_bounds = array<i64: 16, 4>}, {pipeline_mode = #tpu.pipeline_mode<synchronous>, transform_indices = @transform_2, window_bounds = array<i64: 16, 1>}, {pipeline_mode = #tpu.pipeline_mode<synchronous>, transform_indices = @transform_3, window_bounds = array<i64: 4, 16>}, {pipeline_mode = #tpu.pipeline_mode<synchronous>, transform_indices = @transform_4, window_bounds = array<i64: 4, 1>}, {transform_indices = @transform_5, window_bounds = array<i64: 2, 4, 256>}]} {
    %c0 = arith.constant 0 : index
    %c0_0 = arith.constant 0 : index
    %0 = vector.load %arg3[%c0, %c0_0] : memref<16x4xbf16, #tpu.memory_space<vmem>>, vector<16x4xbf16>
    %c0_1 = arith.constant 0 : index
    %c0_2 = arith.constant 0 : index
    %1 = vector.load %arg5[%c0_1, %c0_2] : memref<4x16xbf16, #tpu.memory_space<vmem>>, vector<4x16xbf16>
    %c0_3 = arith.constant 0 : index
    %c0_4 = arith.constant 0 : index
    %2 = vector.load %arg4[%c0_3, %c0_4] : memref<16x1xf32, #tpu.memory_space<vmem>>, vector<16x1xf32>
    %c0_5 = arith.constant 0 : index
    %c0_6 = arith.constant 0 : index
    %3 = vector.load %arg6[%c0_5, %c0_6] : memref<4x1xf32, #tpu.memory_space<vmem>>, vector<4x1xf32>
    %c0_7 = arith.constant 0 : index
    %c0_8 = arith.constant 0 : index
    %c0_9 = arith.constant 0 : index
    %4 = vector.load %arg2[%c0_7, %c0_8, %c0_9] : memref<2x4x256xf32, #tpu.memory_space<vmem>>, vector<1x4x256xf32>
    %5 = vector.shape_cast %4 : vector<1x4x256xf32> to vector<4x256xf32>
    %6 = arith.truncf %5 : vector<4x256xf32> to vector<4x256xbf16>
    %cst = arith.constant dense<0.000000e+00> : vector<16x256xf32>
    %7 = tpu.matmul %0, %6, %cst {dimension_numbers = #tpu.dot_dimension_numbers<[1], [0], [0], [1], [0, 0, 1, 1], [], []>} : vector<16x4xbf16>, vector<4x256xbf16>, vector<16x256xf32> -> vector<16x256xf32>
    %8 = vector.broadcast %2 : vector<16x1xf32> to vector<16x256xf32>
    %9 = arith.addf %7, %8 : vector<16x256xf32>
    %cst_10 = arith.constant 0.000000e+00 : f32
    %10 = vector.broadcast %cst_10 : f32 to vector<16x256xf32>
    %11 = arith.maximumf %9, %10 : vector<16x256xf32>
    %12 = arith.truncf %11 : vector<16x256xf32> to vector<16x256xbf16>
    %cst_11 = arith.constant dense<0.000000e+00> : vector<4x256xf32>
    %13 = tpu.matmul %1, %12, %cst_11 {dimension_numbers = #tpu.dot_dimension_numbers<[1], [0], [0], [1], [0, 0, 1, 1], [], []>} : vector<4x16xbf16>, vector<16x256xbf16>, vector<4x256xf32> -> vector<4x256xf32>
    %14 = vector.broadcast %3 : vector<4x1xf32> to vector<4x256xf32>
    %15 = arith.addf %13, %14 : vector<4x256xf32>
    %16 = arith.addf %15, %5 : vector<4x256xf32>
    %c0_12 = arith.constant 0 : index
    %c0_13 = arith.constant 0 : index
    %c0_14 = arith.constant 0 : index
    %17 = vector.load %arg7[%c0_12, %c0_13, %c0_14] : memref<2x4x256xf32, #tpu.memory_space<vmem>>, vector<1x4x256xf32>
    %18 = vector.shape_cast %17 : vector<1x4x256xf32> to vector<4x256xf32>
    %19 = vector.shape_cast %16 : vector<4x256xf32> to vector<1x4x256xf32>
    tpu.vector_store %arg7[%c0_12, %c0_13, %c0_14], %19 {strides = array<i32>} : memref<2x4x256xf32, #tpu.memory_space<vmem>>, vector<1x4x256xf32>,
    %c1 = arith.constant 1 : index
    %c0_15 = arith.constant 0 : index
    %c0_16 = arith.constant 0 : index
    %20 = vector.load %arg2[%c1, %c0_15, %c0_16] : memref<2x4x256xf32, #tpu.memory_space<vmem>>, vector<1x4x256xf32>
    %21 = vector.shape_cast %20 : vector<1x4x256xf32> to vector<4x256xf32>
    %22 = arith.truncf %21 : vector<4x256xf32> to vector<4x256xbf16>
    %cst_17 = arith.constant dense<0.000000e+00> : vector<16x256xf32>
    %23 = tpu.matmul %0, %22, %cst_17 {dimension_numbers = #tpu.dot_dimension_numbers<[1], [0], [0], [1], [0, 0, 1, 1], [], []>} : vector<16x4xbf16>, vector<4x256xbf16>, vector<16x256xf32> -> vector<16x256xf32>
    %24 = vector.broadcast %2 : vector<16x1xf32> to vector<16x256xf32>
    %25 = arith.addf %23, %24 : vector<16x256xf32>
    %cst_18 = arith.constant 0.000000e+00 : f32
    %26 = vector.broadcast %cst_18 : f32 to vector<16x256xf32>
    %27 = arith.maximumf %25, %26 : vector<16x256xf32>
    %28 = arith.truncf %27 : vector<16x256xf32> to vector<16x256xbf16>
    %cst_19 = arith.constant dense<0.000000e+00> : vector<4x256xf32>
    %29 = tpu.matmul %1, %28, %cst_19 {dimension_numbers = #tpu.dot_dimension_numbers<[1], [0], [0], [1], [0, 0, 1, 1], [], []>} : vector<4x16xbf16>, vector<16x256xbf16>, vector<4x256xf32> -> vector<4x256xf32>
    %30 = vector.broadcast %3 : vector<4x1xf32> to vector<4x256xf32>
    %31 = arith.addf %29, %30 : vector<4x256xf32>
    %32 = arith.addf %31, %21 : vector<4x256xf32>
    %c1_20 = arith.constant 1 : index
    %c0_21 = arith.constant 0 : index
    %c0_22 = arith.constant 0 : index
    %33 = vector.load %arg7[%c1_20, %c0_21, %c0_22] : memref<2x4x256xf32, #tpu.memory_space<vmem>>, vector<1x4x256xf32>
    %34 = vector.shape_cast %33 : vector<1x4x256xf32> to vector<4x256xf32>
    %35 = vector.shape_cast %32 : vector<4x256xf32> to vector<1x4x256xf32>
    tpu.vector_store %arg7[%c1_20, %c0_21, %c0_22], %35 {strides = array<i32>} : memref<2x4x256xf32, #tpu.memory_space<vmem>>, vector<1x4x256xf32>,
    return
  }
  func.func @transform_0(%arg0: i32, %arg1: i32) -> (i32, i32, i32) {
    %c0_i32 = arith.constant 0 : i32
    %c0_i32_0 = arith.constant 0 : i32
    return %arg0, %c0_i32, %arg1 : i32, i32, i32
  }
  func.func @transform_1(%arg0: i32, %arg1: i32) -> (i32, i32) {
    %c0_i32 = arith.constant 0 : i32
    %c0_i32_0 = arith.constant 0 : i32
    %c0_i32_1 = arith.constant 0 : i32
    return %c0_i32, %c0_i32_0 : i32, i32
  }
  func.func @transform_2(%arg0: i32, %arg1: i32) -> (i32, i32) {
    %c0_i32 = arith.constant 0 : i32
    %c0_i32_0 = arith.constant 0 : i32
    %c0_i32_1 = arith.constant 0 : i32
    return %c0_i32, %c0_i32_0 : i32, i32
  }
  func.func @transform_3(%arg0: i32, %arg1: i32) -> (i32, i32) {
    %c0_i32 = arith.constant 0 : i32
    %c0_i32_0 = arith.constant 0 : i32
    %c0_i32_1 = arith.constant 0 : i32
    return %c0_i32, %c0_i32_0 : i32, i32
  }
  func.func @transform_4(%arg0: i32, %arg1: i32) -> (i32, i32) {
    %c0_i32 = arith.constant 0 : i32
    %c0_i32_0 = arith.constant 0 : i32
    %c0_i32_1 = arith.constant 0 : i32
    return %c0_i32, %c0_i32_0 : i32, i32
  }
  func.func @transform_5(%arg0: i32, %arg1: i32) -> (i32, i32, i32) {
    %c0_i32 = arith.constant 0 : i32
    %c0_i32_0 = arith.constant 0 : i32
    return %arg0, %c0_i32, %arg1 : i32, i32, i32
  }
}

module attributes {stable_mosaic.version = 11 : i64} {
  func.func @ffn_kernel(%arg0: i32, %arg1: i32, %arg2: memref<2x4x256xf32, #tpu.memory_space<vmem>>, %arg3: memref<16x4xbf16, #tpu.memory_space<vmem>>, %arg4: memref<16x1xf32, #tpu.memory_space<vmem>>, %arg5: memref<4x16xbf16, #tpu.memory_space<vmem>>, %arg6: memref<4x1xf32, #tpu.memory_space<vmem>>, %arg7: memref<2x4x256xf32, #tpu.memory_space<vmem>>) attributes {dimension_semantics = [#tpu.dimension_semantics<parallel>, #tpu.dimension_semantics<parallel>], iteration_bounds = array<i64: 1, 1>, scalar_prefetch = 0 : i64, scratch_operands = 0 : i64, tpu.core_type = #tpu.core_type<tc>, window_params = [{transform_indices = @transform_0, window_bounds = array<i64: 2, 4, 256>}, {pipeline_mode = #tpu.pipeline_mode<synchronous>, transform_indices = @transform_1, window_bounds = array<i64: 16, 4>}, {pipeline_mode = #tpu.pipeline_mode<synchronous>, transform_indices = @transform_2, window_bounds = array<i64: 16, 1>}, {pipeline_mode = #tpu.pipeline_mode<synchronous>, transform_indices = @transform_3, window_bounds = array<i64: 4, 16>}, {pipeline_mode = #tpu.pipeline_mode<synchronous>, transform_indices = @transform_4, window_bounds = array<i64: 4, 1>}, {transform_indices = @transform_5, window_bounds = array<i64: 2, 4, 256>}]} {
    %c0 = arith.constant 0 : index
    %c0_0 = arith.constant 0 : index
    %0 = vector.load %arg3[%c0, %c0_0] : memref<16x4xbf16, #tpu.memory_space<vmem>>, vector<16x4xbf16>
    %c0_1 = arith.constant 0 : index
    %c0_2 = arith.constant 0 : index
    %1 = vector.load %arg5[%c0_1, %c0_2] : memref<4x16xbf16, #tpu.memory_space<vmem>>, vector<4x16xbf16>
    %c0_3 = arith.constant 0 : index
    %c0_4 = arith.constant 0 : index
    %2 = vector.load %arg4[%c0_3, %c0_4] : memref<16x1xf32, #tpu.memory_space<vmem>>, vector<16x1xf32>
    %c0_5 = arith.constant 0 : index
    %c0_6 = arith.constant 0 : index
    %3 = vector.load %arg6[%c0_5, %c0_6] : memref<4x1xf32, #tpu.memory_space<vmem>>, vector<4x1xf32>
    %c0_7 = arith.constant 0 : index
    %c0_8 = arith.constant 0 : index
    %c0_9 = arith.constant 0 : index
    %4 = vector.load %arg2[%c0_7, %c0_8, %c0_9] : memref<2x4x256xf32, #tpu.memory_space<vmem>>, vector<1x4x256xf32>
    %5 = vector.shape_cast %4 : vector<1x4x256xf32> to vector<4x256xf32>
    %6 = arith.truncf %5 : vector<4x256xf32> to vector<4x256xbf16>
    %cst = arith.constant dense<0.000000e+00> : vector<16x256xf32>
    %7 = tpu.matmul %0, %6, %cst {dimension_numbers = #tpu.dot_dimension_numbers<[1], [0], [0], [1], [0, 0, 1, 1], [], []>} : vector<16x4xbf16>, vector<4x256xbf16>, vector<16x256xf32> -> vector<16x256xf32>
    %8 = vector.broadcast %2 : vector<16x1xf32> to vector<16x256xf32>
    %9 = arith.addf %7, %8 : vector<16x256xf32>
    %cst_10 = arith.constant 0.000000e+00 : f32
    %10 = vector.broadcast %cst_10 : f32 to vector<16x256xf32>
    %11 = arith.maximumf %9, %10 : vector<16x256xf32>
    %12 = arith.truncf %11 : vector<16x256xf32> to vector<16x256xbf16>
    %cst_11 = arith.constant dense<0.000000e+00> : vector<4x256xf32>
    %13 = tpu.matmul %1, %12, %cst_11 {dimension_numbers = #tpu.dot_dimension_numbers<[1], [0], [0], [1], [0, 0, 1, 1], [], []>} : vector<4x16xbf16>, vector<16x256xbf16>, vector<4x256xf32> -> vector<4x256xf32>
    %14 = vector.broadcast %3 : vector<4x1xf32> to vector<4x256xf32>
    %15 = arith.addf %13, %14 : vector<4x256xf32>
    %16 = arith.addf %15, %5 : vector<4x256xf32>
    %c0_12 = arith.constant 0 : index
    %c0_13 = arith.constant 0 : index
    %c0_14 = arith.constant 0 : index
    %17 = vector.load %arg7[%c0_12, %c0_13, %c0_14] : memref<2x4x256xf32, #tpu.memory_space<vmem>>, vector<1x4x256xf32>
    %18 = vector.shape_cast %17 : vector<1x4x256xf32> to vector<4x256xf32>
    %19 = vector.shape_cast %16 : vector<4x256xf32> to vector<1x4x256xf32>
    tpu.vector_store %arg7[%c0_12, %c0_13, %c0_14], %19 {strides = array<i32>} : memref<2x4x256xf32, #tpu.memory_space<vmem>>, vector<1x4x256xf32>,
    %c1 = arith.constant 1 : index
    %c0_15 = arith.constant 0 : index
    %c0_16 = arith.constant 0 : index
    %20 = vector.load %arg2[%c1, %c0_15, %c0_16] : memref<2x4x256xf32, #tpu.memory_space<vmem>>, vector<1x4x256xf32>
    %21 = vector.shape_cast %20 : vector<1x4x256xf32> to vector<4x256xf32>
    %22 = arith.truncf %21 : vector<4x256xf32> to vector<4x256xbf16>
    %cst_17 = arith.constant dense<0.000000e+00> : vector<16x256xf32>
    %23 = tpu.matmul %0, %22, %cst_17 {dimension_numbers = #tpu.dot_dimension_numbers<[1], [0], [0], [1], [0, 0, 1, 1], [], []>} : vector<16x4xbf16>, vector<4x256xbf16>, vector<16x256xf32> -> vector<16x256xf32>
    %24 = vector.broadcast %2 : vector<16x1xf32> to vector<16x256xf32>
    %25 = arith.addf %23, %24 : vector<16x256xf32>
    %cst_18 = arith.constant 0.000000e+00 : f32
    %26 = vector.broadcast %cst_18 : f32 to vector<16x256xf32>
    %27 = arith.maximumf %25, %26 : vector<16x256xf32>
    %28 = arith.truncf %27 : vector<16x256xf32> to vector<16x256xbf16>
    %cst_19 = arith.constant dense<0.000000e+00> : vector<4x256xf32>
    %29 = tpu.matmul %1, %28, %cst_19 {dimension_numbers = #tpu.dot_dimension_numbers<[1], [0], [0], [1], [0, 0, 1, 1], [], []>} : vector<4x16xbf16>, vector<16x256xbf16>, vector<4x256xf32> -> vector<4x256xf32>
    %30 = vector.broadcast %3 : vector<4x1xf32> to vector<4x256xf32>
    %31 = arith.addf %29, %30 : vector<4x256xf32>
    %32 = arith.addf %31, %21 : vector<4x256xf32>
    %c1_20 = arith.constant 1 : index
    %c0_21 = arith.constant 0 : index
    %c0_22 = arith.constant 0 : index
    %33 = vector.load %arg7[%c1_20, %c0_21, %c0_22] : memref<2x4x256xf32, #tpu.memory_space<vmem>>, vector<1x4x256xf32>
    %34 = vector.shape_cast %33 : vector<1x4x256xf32> to vector<4x256xf32>
    %35 = vector.shape_cast %32 : vector<4x256xf32> to vector<1x4x256xf32>
    tpu.vector_store %arg7[%c1_20, %c0_21, %c0_22], %35 {strides = array<i32>} : memref<2x4x256xf32, #tpu.memory_space<vmem>>, vector<1x4x256xf32>,
    return
  }
  func.func @transform_0(%arg0: i32, %arg1: i32) -> (i32, i32, i32) {
    %c0_i32 = arith.constant 0 : i32
    %c0_i32_0 = arith.constant 0 : i32
    return %arg0, %c0_i32, %arg1 : i32, i32, i32
  }
  func.func @transform_1(%arg0: i32, %arg1: i32) -> (i32, i32) {
    %c0_i32 = arith.constant 0 : i32
    %c0_i32_0 = arith.constant 0 : i32
    %c0_i32_1 = arith.constant 0 : i32
    return %c0_i32, %c0_i32_0 : i32, i32
  }
  func.func @transform_2(%arg0: i32, %arg1: i32) -> (i32, i32) {
    %c0_i32 = arith.constant 0 : i32
    %c0_i32_0 = arith.constant 0 : i32
    %c0_i32_1 = arith.constant 0 : i32
    return %c0_i32, %c0_i32_0 : i32, i32
  }
  func.func @transform_3(%arg0: i32, %arg1: i32) -> (i32, i32) {
    %c0_i32 = arith.constant 0 : i32
    %c0_i32_0 = arith.constant 0 : i32
    %c0_i32_1 = arith.constant 0 : i32
    return %c0_i32, %c0_i32_0 : i32, i32
  }
  func.func @transform_4(%arg0: i32, %arg1: i32) -> (i32, i32) {
    %c0_i32 = arith.constant 0 : i32
    %c0_i32_0 = arith.constant 0 : i32
    %c0_i32_1 = arith.constant 0 : i32
    return %c0_i32, %c0_i32_0 : i32, i32
  }
  func.func @transform_5(%arg0: i32, %arg1: i32) -> (i32, i32, i32) {
    %c0_i32 = arith.constant 0 : i32
    %c0_i32_0 = arith.constant 0 : i32
    return %arg0, %c0_i32, %arg1 : i32, i32, i32
  }
}

</mosaic_0001>

<llo_original>
// kernel: tpu_custom_call.1
$region0: #{tpu_custom_call.1}
  #allocation0 [shape = 'u32[]', space=smem, size = 0x4, offset = 0x4, fixed_abs, tag = 'smem constant byte address 0x4 - core index']
  #allocation1 [shape = 'u32[144,128]{1,0:T(1,128)}', space=vmem, size = 0x12000, scoped, tag = 'internal scratch']
  %s0 = inlined_call_operand.vmem [shape: f32[2,4,256], index: 0, kind: input, shape index: {}]
  %s1 = inlined_call_operand.vmem [shape: bf16[16,4], index: 1, kind: input, shape index: {}]
  %s2 = inlined_call_operand.vmem [shape: f32[16,1], index: 2, kind: input, shape index: {}]
  %s3 = inlined_call_operand.vmem [shape: bf16[4,16], index: 3, kind: input, shape index: {}]
  %s4 = inlined_call_operand.vmem [shape: f32[4,1], index: 4, kind: input, shape index: {}]
  %s5 = inlined_call_operand.hbm [shape: f32[2,4,256], index: 5, kind: output, shape index: {}]
  %s6 = sld [smem:[#allocation0]]
  $region30: #{tpu_custom_call.1} parent=0
    _
  %s8 = ssub.s32 1, %s6
  %s9 = scalar_select 0, %s8, %s6
  $region1: #{tpu_custom_call.1} parent=0
    #allocation2 [shape = 'u8[8192]{0}', space=vmem, size = 0x2000, scoped, tag = 'output window, operand 0, single buffered']
    #allocation3 [shape = 's32[1]{0}', space=sflag, size = 0x4, scoped, tag = 'scoped memory for tpu_custom_call.1']
    %10 = vsyncpa [#allocation3], 0
    // Predicated region
    $region2: #{tpu_custom_call.1} parent=1 // pred_check
      _
    $region3: #{tpu_custom_call.1} parent=1 // pred_check_branch
      %12 = sbr.rel (0) target = $region5
    $region4: #{tpu_custom_call.1} parent=1 // pred_region
      _
    $region5: #{tpu_custom_call.1} parent=1 // pred_fallthru
      _
    // Predicated region
    $region6: #{tpu_custom_call.1} parent=1 // pred_check
      _
    $region7: #{tpu_custom_call.1} parent=1 // pred_check_branch
      %14 = sbr.rel (0) target = $region9
    $region8: #{tpu_custom_call.1} parent=1 // pred_region
      _
    $region9: #{tpu_custom_call.1} parent=1 // pred_fallthru
      _
    // Predicated region
    $region10: #{tpu_custom_call.1} parent=1 // pred_check
      _
    $region11: #{tpu_custom_call.1} parent=1 // pred_check_branch
      %16 = sbr.rel (0) target = $region13
    $region12: #{tpu_custom_call.1} parent=1 // pred_region
      _
    $region13: #{tpu_custom_call.1} parent=1 // pred_fallthru
      _
    // Predicated region
    $region14: #{tpu_custom_call.1} parent=1 // pred_check
      _
    $region15: #{tpu_custom_call.1} parent=1 // pred_check_branch
      %18 = sbr.rel (0) target = $region17
    $region16: #{tpu_custom_call.1} parent=1 // pred_region
      _
    $region17: #{tpu_custom_call.1} parent=1 // pred_fallthru
      _
    // Predicated region
    $region18: #{tpu_custom_call.1} parent=1 // pred_check
      _
    $region19: #{tpu_custom_call.1} parent=1 // pred_check_branch
      %20 = sbr.rel (0) target = $region21
    $region20: #{tpu_custom_call.1} parent=1 // pred_region
      _
    $region21: #{tpu_custom_call.1} parent=1 // pred_fallthru
      _
    %v22 = vld [vmem:[%s1] sm:$0xf]
    %v23 = vld [vmem:[%s1 + $0x4] sm:$0xf]
    %v24 = vld [vmem:[%s3] sm:$0x3]
    %v25 = vld [vmem:[%s2] sm:$0xff]
    %v26 = vld [vmem:[%s2 + $0x8] sm:$0xff]
    %v27 = vld [vmem:[%s4] sm:$0xf]
    %v28 = vld [vmem:[%s0] sm:$0xff]
    %v30 = vcombine.high %v28, %v28
    %v32 = vpack.c.bf16 %v28, %v28
    %v33 = vpack.c.bf16 %v30, %v30
    %35 = vset.pattern.permute.xlu0 0
    %36 = vperm.xlu0 %35, %v25
    %v37 = vpop.permute.xlu0 %36
    %40 = vset.pattern.permute.xlu0 0
    %41 = vperm.xlu0 %40, %v26
    %v42 = vpop.permute.xlu0 %41
    %v46 = vunpack.c.l.b16 %v22
    %v47 = vunpack.c.l.b16 %v23
    %v48 = vpack.c.b16 %v47, %v46
    %vm49 = vcmask 31744
    %v51 = vsel %vm49, %v48, 0
    %vm53 = vcmask 1041408
    %v55 = vsel %vm53, %v32, 0
    %v58 = vsel %vm53, %v33, 0
    %60 = vmatprep.subr.bf16.mxu0 %v58
    %61 = vmatpush1.bf16.msra.mxu0 %v55
    %62 = vmatprep.subr.bf16.mxu0 0
    %63 = vmatpush1.bf16.msra.mxu0 0
    %64 = vmatprep.subr.bf16.mxu0 0
    %65 = vmatpush1.bf16.msra.mxu0 0
    %66 = vmatprep.subr.bf16.mxu0 0
    %67 = vmatpush1.bf16.msra.mxu0 0
    %68 = vmatprep.subr.bf16.mxu0 0
    %69 = vmatpush1.bf16.msra.mxu0 0
    %70 = vmatprep.subr.bf16.mxu0 0
    %71 = vmatpush1.bf16.msra.mxu0 0
    %72 = vmatprep.subr.bf16.mxu0 0
    %73 = vmatpush1.bf16.msra.mxu0 0
    %74 = vmatprep.subr.bf16.mxu0 0
    %75 = vmatpush1.bf16.msra.mxu0 0
    %76 = vmatprep.subr.bf16.mxu0 0
    %77 = vmatpush1.bf16.msra.mxu0 0
    %78 = vmatprep.subr.bf16.mxu0 0
    %79 = vmatpush1.bf16.msra.mxu0 0
    %80 = vmatprep.subr.bf16.mxu0 0
    %81 = vmatpush1.bf16.msra.mxu0 0
    %82 = vmatprep.subr.bf16.mxu0 0
    %83 = vmatpush1.bf16.msra.mxu0 0
    %84 = vmatprep.subr.bf16.mxu0 0
    %85 = vmatpush1.bf16.msra.mxu0 0
    %86 = vmatprep.subr.bf16.mxu0 0
    %87 = vmatpush1.bf16.msra.mxu0 0
    %88 = vmatprep.subr.bf16.mxu0 0
    %89 = vmatpush1.bf16.msra.mxu0 0
    %90 = vmatprep.subr.bf16.mxu0 0
    %91 = vmatpush1.bf16.msra.mxu0 0
    %92 = vmatprep.mubr.bf16.mxu0 0
    %93 = vmatmul.mubr.bf16.gmra.mrb[0].mxu0 %v51
    %v94 = vpop.f32.mrb[0].mxu0
    %v95 = vadd.f32 %v37, %v94
    %v96 = vpop.f32.mrb[0].mxu0
    %v97 = vadd.f32 %v37, %v96
    %v98 = vpop.f32.mrb[0].mxu0
    %v99 = vadd.f32 %v42, %v98
    %v100 = vpop.f32.mrb[0].mxu0
    %v101 = vadd.f32 %v42, %v100
    %102 = vdwg.mxu0
    %v103 = vmax.f32 %v95, 0.0
    %v104 = vmax.f32 %v97, 0.0
    %v105 = vmax.f32 %v99, 0.0
    %v106 = vmax.f32 %v101, 0.0
    %v107 = vpack.c.bf16 %v105, %v103
    %v108 = vpack.c.bf16 %v106, %v104
    %110 = vset.pattern.permute.xlu0 0
    %111 = vperm.xlu0 %110, %v27
    %v112 = vpop.permute.xlu0 %111
    %vm114 = vcmask 130048
    %v116 = vsel %vm114, %v24, 0
    %118 = vmatprep.subr.bf16.mxu0 %v108
    %119 = vmatpush1.bf16.msra.mxu0 %v107
    %120 = vmatprep.subr.bf16.mxu0 0
    %121 = vmatpush1.bf16.msra.mxu0 0
    %122 = vmatprep.subr.bf16.mxu0 0
    %123 = vmatpush1.bf16.msra.mxu0 0
    %124 = vmatprep.subr.bf16.mxu0 0
    %125 = vmatpush1.bf16.msra.mxu0 0
    %126 = vmatprep.subr.bf16.mxu0 0
    %127 = vmatpush1.bf16.msra.mxu0 0
    %128 = vmatprep.subr.bf16.mxu0 0
    %129 = vmatpush1.bf16.msra.mxu0 0
    %130 = vmatprep.subr.bf16.mxu0 0
    %131 = vmatpush1.bf16.msra.mxu0 0
    %132 = vmatprep.subr.bf16.mxu0 0
    %133 = vmatpush1.bf16.msra.mxu0 0
    %134 = vmatprep.subr.bf16.mxu0 0
    %135 = vmatpush1.bf16.msra.mxu0 0
    %136 = vmatprep.subr.bf16.mxu0 0
    %137 = vmatpush1.bf16.msra.mxu0 0
    %138 = vmatprep.subr.bf16.mxu0 0
    %139 = vmatpush1.bf16.msra.mxu0 0
    %140 = vmatprep.subr.bf16.mxu0 0
    %141 = vmatpush1.bf16.msra.mxu0 0
    %142 = vmatprep.subr.bf16.mxu0 0
    %143 = vmatpush1.bf16.msra.mxu0 0
    %144 = vmatprep.subr.bf16.mxu0 0
    %145 = vmatpush1.bf16.msra.mxu0 0
    %146 = vmatprep.subr.bf16.mxu0 0
    %147 = vmatpush1.bf16.msra.mxu0 0
    %148 = vmatprep.subr.bf16.mxu0 0
    %149 = vmatpush1.bf16.msra.mxu0 0
    %150 = vmatprep.mubr.bf16.mxu0 0
    %151 = vmatmul.mubr.bf16.gmra.mrb[0].mxu0 %v116
    %v152 = vpop.f32.mrb[0].mxu0
    %v153 = vadd.f32 %v112, %v152
    %v154 = vpop.f32.mrb[0].mxu0
    %v155 = vadd.f32 %v112, %v154
    %v156 = vpop.f32.mrb[0].mxu0
    %v157 = vpop.f32.mrb[0].mxu0
    %158 = vdwg.mxu0
    %v159 = vadd.f32 %v153, %v28
    %v160 = vadd.f32 %v155, %v30
    %v163 = vcombine.low %v159, %v160
    %165 = vst [vmem:[#allocation2] sm:$0xff] %v163
    %s166 = scalar_lea.vmem %s0, 8
    %v167 = vld [vmem:[%s166] sm:$0xff]
    %v169 = vcombine.high %v167, %v167
    %v171 = vpack.c.bf16 %v167, %v167
    %v172 = vpack.c.bf16 %v169, %v169
    %v174 = vsel %vm53, %v171, 0
    %v177 = vsel %vm53, %v172, 0
    %179 = vmatprep.subr.bf16.mxu0 %v177
    %180 = vmatpush1.bf16.msra.mxu0 %v174
    %181 = vmatprep.subr.bf16.mxu0 0
    %182 = vmatpush1.bf16.msra.mxu0 0
    %183 = vmatprep.subr.bf16.mxu0 0
    %184 = vmatpush1.bf16.msra.mxu0 0
    %185 = vmatprep.subr.bf16.mxu0 0
    %186 = vmatpush1.bf16.msra.mxu0 0
    %187 = vmatprep.subr.bf16.mxu0 0
    %188 = vmatpush1.bf16.msra.mxu0 0
    %189 = vmatprep.subr.bf16.mxu0 0
    %190 = vmatpush1.bf16.msra.mxu0 0
    %191 = vmatprep.subr.bf16.mxu0 0
    %192 = vmatpush1.bf16.msra.mxu0 0
    %193 = vmatprep.subr.bf16.mxu0 0
    %194 = vmatpush1.bf16.msra.mxu0 0
    %195 = vmatprep.subr.bf16.mxu0 0
    %196 = vmatpush1.bf16.msra.mxu0 0
    %197 = vmatprep.subr.bf16.mxu0 0
    %198 = vmatpush1.bf16.msra.mxu0 0
    %199 = vmatprep.subr.bf16.mxu0 0
    %200 = vmatpush1.bf16.msra.mxu0 0
    %201 = vmatprep.subr.bf16.mxu0 0
    %202 = vmatpush1.bf16.msra.mxu0 0
    %203 = vmatprep.subr.bf16.mxu0 0
    %204 = vmatpush1.bf16.msra.mxu0 0
    %205 = vmatprep.subr.bf16.mxu0 0
    %206 = vmatpush1.bf16.msra.mxu0 0
    %207 = vmatprep.subr.bf16.mxu0 0
    %208 = vmatpush1.bf16.msra.mxu0 0
    %209 = vmatprep.subr.bf16.mxu0 0
    %210 = vmatpush1.bf16.msra.mxu0 0
    %211 = vmatprep.mubr.bf16.mxu0 0
    %212 = vmatmul.mubr.bf16.gmra.mrb[0].mxu0 %v51
    %v213 = vpop.f32.mrb[0].mxu0
    %v214 = vadd.f32 %v37, %v213
    %v215 = vpop.f32.mrb[0].mxu0
    %v216 = vadd.f32 %v37, %v215
    %v217 = vpop.f32.mrb[0].mxu0
    %v218 = vadd.f32 %v42, %v217
    %v219 = vpop.f32.mrb[0].mxu0
    %v220 = vadd.f32 %v42, %v219
    %221 = vdwg.mxu0
    %v222 = vmax.f32 %v214, 0.0
    %v223 = vmax.f32 %v216, 0.0
    %v224 = vmax.f32 %v218, 0.0
    %v225 = vmax.f32 %v220, 0.0
    %v226 = vpack.c.bf16 %v224, %v222
    %v227 = vpack.c.bf16 %v225, %v223
    %228 = vmatprep.subr.bf16.mxu0 %v227
    %229 = vmatpush1.bf16.msra.mxu0 %v226
    %230 = vmatprep.subr.bf16.mxu0 0
    %231 = vmatpush1.bf16.msra.mxu0 0
    %232 = vmatprep.subr.bf16.mxu0 0
    %233 = vmatpush1.bf16.msra.mxu0 0
    %234 = vmatprep.subr.bf16.mxu0 0
    %235 = vmatpush1.bf16.msra.mxu0 0
    %236 = vmatprep.subr.bf16.mxu0 0
    %237 = vmatpush1.bf16.msra.mxu0 0
    %238 = vmatprep.subr.bf16.mxu0 0
    %239 = vmatpush1.bf16.msra.mxu0 0
    %240 = vmatprep.subr.bf16.mxu0 0
    %241 = vmatpush1.bf16.msra.mxu0 0
    %242 = vmatprep.subr.bf16.mxu0 0
    %243 = vmatpush1.bf16.msra.mxu0 0
    %244 = vmatprep.subr.bf16.mxu0 0
    %245 = vmatpush1.bf16.msra.mxu0 0
    %246 = vmatprep.subr.bf16.mxu0 0
    %247 = vmatpush1.bf16.msra.mxu0 0
    %248 = vmatprep.subr.bf16.mxu0 0
    %249 = vmatpush1.bf16.msra.mxu0 0
    %250 = vmatprep.subr.bf16.mxu0 0
    %251 = vmatpush1.bf16.msra.mxu0 0
    %252 = vmatprep.subr.bf16.mxu0 0
    %253 = vmatpush1.bf16.msra.mxu0 0
    %254 = vmatprep.subr.bf16.mxu0 0
    %255 = vmatpush1.bf16.msra.mxu0 0
    %256 = vmatprep.subr.bf16.mxu0 0
    %257 = vmatpush1.bf16.msra.mxu0 0
    %258 = vmatprep.subr.bf16.mxu0 0
    %259 = vmatpush1.bf16.msra.mxu0 0
    %260 = vmatprep.mubr.bf16.mxu0 0
    %261 = vmatmul.mubr.bf16.gmra.mrb[0].mxu0 %v116
    %v262 = vpop.f32.mrb[0].mxu0
    %v263 = vadd.f32 %v112, %v262
    %v264 = vpop.f32.mrb[0].mxu0
    %v265 = vadd.f32 %v112, %v264
    %v266 = vpop.f32.mrb[0].mxu0
    %v267 = vpop.f32.mrb[0].mxu0
    %268 = vdwg.mxu0
    %v269 = vadd.f32 %v263, %v167
    %v270 = vadd.f32 %v265, %v169
    %v273 = vcombine.low %v269, %v270
    %s275 = scalar_lea.vmem [#allocation2], 8
    %276 = vst [vmem:[%s275] sm:$0xff] %v273
    // Predicated region
    $region22: #{tpu_custom_call.1} parent=1 // pred_check
      _
    $region23: #{tpu_custom_call.1} parent=1 // pred_check_branch
      %278 = sbr.rel (0) target = $region25
    $region24: #{tpu_custom_call.1} parent=1 // pred_region
      %s280 = ssub.s32 256, 256
      %281 = vsyncadd [#allocation3], %s280
      %s282 = sshll.u32 [#allocation2], 4
      %s283 = int_to_ptr.vmem [resolvable:$true] %s282
      %288 = dma.vmem_to_hbm [thread:$0]  %s283, 256, %s5, [#allocation3], 128, 128, 8
    $region25: #{tpu_custom_call.1} parent=1 // pred_fallthru
      _
    // Predicated region
    $region26: #{tpu_custom_call.1} parent=1 // pred_check
      _
    $region27: #{tpu_custom_call.1} parent=1 // pred_check_branch
      %290 = sbr.rel (0) target = $region29
    $region28: #{tpu_custom_call.1} parent=1 // pred_region
      %291 = dma.done [#allocation3], 256
    $region29: #{tpu_custom_call.1} parent=1 // pred_fallthru
      _
    %292 = vsyncpa [#allocation3], 1

// kernel: tpu_custom_call.1
$region0: #{tpu_custom_call.1}
  #allocation0 [shape = 'u32[]', space=smem, size = 0x4, offset = 0x4, fixed_abs, tag = 'smem constant byte address 0x4 - core index']
  #allocation1 [shape = 'u32[144,128]{1,0:T(1,128)}', space=vmem, size = 0x12000, scoped, tag = 'internal scratch']
  %s0 = inlined_call_operand.vmem [shape: f32[2,4,256], index: 0, kind: input, shape index: {}]
  %s1 = inlined_call_operand.vmem [shape: bf16[16,4], index: 1, kind: input, shape index: {}]
  %s2 = inlined_call_operand.vmem [shape: f32[16,1], index: 2, kind: input, shape index: {}]
  %s3 = inlined_call_operand.vmem [shape: bf16[4,16], index: 3, kind: input, shape index: {}]
  %s4 = inlined_call_operand.vmem [shape: f32[4,1], index: 4, kind: input, shape index: {}]
  %s5 = inlined_call_operand.hbm [shape: f32[2,4,256], index: 5, kind: output, shape index: {}]
  %s6 = sld [smem:[#allocation0]]
  $region30: #{tpu_custom_call.1} parent=0
    _
  %s8 = ssub.s32 1, %s6
  %s9 = scalar_select 0, %s8, %s6
  $region1: #{tpu_custom_call.1} parent=0
    #allocation2 [shape = 'u8[8192]{0}', space=vmem, size = 0x2000, scoped, tag = 'output window, operand 0, single buffered']
    #allocation3 [shape = 's32[1]{0}', space=sflag, size = 0x4, scoped, tag = 'scoped memory for tpu_custom_call.1']
    %10 = vsyncpa [#allocation3], 0
    // Predicated region
    $region2: #{tpu_custom_call.1} parent=1 // pred_check
      _
    $region3: #{tpu_custom_call.1} parent=1 // pred_check_branch
      %12 = sbr.rel (0) target = $region5
    $region4: #{tpu_custom_call.1} parent=1 // pred_region
      _
    $region5: #{tpu_custom_call.1} parent=1 // pred_fallthru
      _
    // Predicated region
    $region6: #{tpu_custom_call.1} parent=1 // pred_check
      _
    $region7: #{tpu_custom_call.1} parent=1 // pred_check_branch
      %14 = sbr.rel (0) target = $region9
    $region8: #{tpu_custom_call.1} parent=1 // pred_region
      _
    $region9: #{tpu_custom_call.1} parent=1 // pred_fallthru
      _
    // Predicated region
    $region10: #{tpu_custom_call.1} parent=1 // pred_check
      _
    $region11: #{tpu_custom_call.1} parent=1 // pred_check_branch
      %16 = sbr.rel (0) target = $region13
    $region12: #{tpu_custom_call.1} parent=1 // pred_region
      _
    $region13: #{tpu_custom_call.1} parent=1 // pred_fallthru
      _
    // Predicated region
    $region14: #{tpu_custom_call.1} parent=1 // pred_check
      _
    $region15: #{tpu_custom_call.1} parent=1 // pred_check_branch
      %18 = sbr.rel (0) target = $region17
    $region16: #{tpu_custom_call.1} parent=1 // pred_region
      _
    $region17: #{tpu_custom_call.1} parent=1 // pred_fallthru
      _
    // Predicated region
    $region18: #{tpu_custom_call.1} parent=1 // pred_check
      _
    $region19: #{tpu_custom_call.1} parent=1 // pred_check_branch
      %20 = sbr.rel (0) target = $region21
    $region20: #{tpu_custom_call.1} parent=1 // pred_region
      _
    $region21: #{tpu_custom_call.1} parent=1 // pred_fallthru
      _
    %v22 = vld [vmem:[%s1] sm:$0xf]
    %v23 = vld [vmem:[%s1 + $0x4] sm:$0xf]
    %v24 = vld [vmem:[%s3] sm:$0x3]
    %v25 = vld [vmem:[%s2] sm:$0xff]
    %v26 = vld [vmem:[%s2 + $0x8] sm:$0xff]
    %v27 = vld [vmem:[%s4] sm:$0xf]
    %v28 = vld [vmem:[%s0] sm:$0xff]
    %v30 = vcombine.high %v28, %v28
    %v32 = vpack.c.bf16 %v28, %v28
    %v33 = vpack.c.bf16 %v30, %v30
    %35 = vset.pattern.permute.xlu0 0
    %36 = vperm.xlu0 %35, %v25
    %v37 = vpop.permute.xlu0 %36
    %40 = vset.pattern.permute.xlu0 0
    %41 = vperm.xlu0 %40, %v26
    %v42 = vpop.permute.xlu0 %41
    %v46 = vunpack.c.l.b16 %v22
    %v47 = vunpack.c.l.b16 %v23
    %v48 = vpack.c.b16 %v47, %v46
    %vm49 = vcmask 31744
    %v51 = vsel %vm49, %v48, 0
    %vm53 = vcmask 1041408
    %v55 = vsel %vm53, %v32, 0
    %v58 = vsel %vm53, %v33, 0
    %60 = vmatprep.subr.bf16.mxu0 %v58
    %61 = vmatpush1.bf16.msra.mxu0 %v55
    %62 = vmatprep.subr.bf16.mxu0 0
    %63 = vmatpush1.bf16.msra.mxu0 0
    %64 = vmatprep.subr.bf16.mxu0 0
    %65 = vmatpush1.bf16.msra.mxu0 0
    %66 = vmatprep.subr.bf16.mxu0 0
    %67 = vmatpush1.bf16.msra.mxu0 0
    %68 = vmatprep.subr.bf16.mxu0 0
    %69 = vmatpush1.bf16.msra.mxu0 0
    %70 = vmatprep.subr.bf16.mxu0 0
    %71 = vmatpush1.bf16.msra.mxu0 0
    %72 = vmatprep.subr.bf16.mxu0 0
    %73 = vmatpush1.bf16.msra.mxu0 0
    %74 = vmatprep.subr.bf16.mxu0 0
    %75 = vmatpush1.bf16.msra.mxu0 0
    %76 = vmatprep.subr.bf16.mxu0 0
    %77 = vmatpush1.bf16.msra.mxu0 0
    %78 = vmatprep.subr.bf16.mxu0 0
    %79 = vmatpush1.bf16.msra.mxu0 0
    %80 = vmatprep.subr.bf16.mxu0 0
    %81 = vmatpush1.bf16.msra.mxu0 0
    %82 = vmatprep.subr.bf16.mxu0 0
    %83 = vmatpush1.bf16.msra.mxu0 0
    %84 = vmatprep.subr.bf16.mxu0 0
    %85 = vmatpush1.bf16.msra.mxu0 0
    %86 = vmatprep.subr.bf16.mxu0 0
    %87 = vmatpush1.bf16.msra.mxu0 0
    %88 = vmatprep.subr.bf16.mxu0 0
    %89 = vmatpush1.bf16.msra.mxu0 0
    %90 = vmatprep.subr.bf16.mxu0 0
    %91 = vmatpush1.bf16.msra.mxu0 0
    %92 = vmatprep.mubr.bf16.mxu0 0
    %93 = vmatmul.mubr.bf16.gmra.mrb[0].mxu0 %v51
    %v94 = vpop.f32.mrb[0].mxu0
    %v95 = vadd.f32 %v37, %v94
    %v96 = vpop.f32.mrb[0].mxu0
    %v97 = vadd.f32 %v37, %v96
    %v98 = vpop.f32.mrb[0].mxu0
    %v99 = vadd.f32 %v42, %v98
    %v100 = vpop.f32.mrb[0].mxu0
    %v101 = vadd.f32 %v42, %v100
    %102 = vdwg.mxu0
    %v103 = vmax.f32 %v95, 0.0
    %v104 = vmax.f32 %v97, 0.0
    %v105 = vmax.f32 %v99, 0.0
    %v106 = vmax.f32 %v101, 0.0
    %v107 = vpack.c.bf16 %v105, %v103
    %v108 = vpack.c.bf16 %v106, %v104
    %110 = vset.pattern.permute.xlu0 0
    %111 = vperm.xlu0 %110, %v27
    %v112 = vpop.permute.xlu0 %111
    %vm114 = vcmask 130048
    %v116 = vsel %vm114, %v24, 0
    %118 = vmatprep.subr.bf16.mxu0 %v108
    %119 = vmatpush1.bf16.msra.mxu0 %v107
    %120 = vmatprep.subr.bf16.mxu0 0
    %121 = vmatpush1.bf16.msra.mxu0 0
    %122 = vmatprep.subr.bf16.mxu0 0
    %123 = vmatpush1.bf16.msra.mxu0 0
    %124 = vmatprep.subr.bf16.mxu0 0
    %125 = vmatpush1.bf16.msra.mxu0 0
    %126 = vmatprep.subr.bf16.mxu0 0
    %127 = vmatpush1.bf16.msra.mxu0 0
    %128 = vmatprep.subr.bf16.mxu0 0
    %129 = vmatpush1.bf16.msra.mxu0 0
    %130 = vmatprep.subr.bf16.mxu0 0
    %131 = vmatpush1.bf16.msra.mxu0 0
    %132 = vmatprep.subr.bf16.mxu0 0
    %133 = vmatpush1.bf16.msra.mxu0 0
    %134 = vmatprep.subr.bf16.mxu0 0
    %135 = vmatpush1.bf16.msra.mxu0 0
    %136 = vmatprep.subr.bf16.mxu0 0
    %137 = vmatpush1.bf16.msra.mxu0 0
    %138 = vmatprep.subr.bf16.mxu0 0
    %139 = vmatpush1.bf16.msra.mxu0 0
    %140 = vmatprep.subr.bf16.mxu0 0
    %141 = vmatpush1.bf16.msra.mxu0 0
    %142 = vmatprep.subr.bf16.mxu0 0
    %143 = vmatpush1.bf16.msra.mxu0 0
    %144 = vmatprep.subr.bf16.mxu0 0
    %145 = vmatpush1.bf16.msra.mxu0 0
    %146 = vmatprep.subr.bf16.mxu0 0
    %147 = vmatpush1.bf16.msra.mxu0 0
    %148 = vmatprep.subr.bf16.mxu0 0
    %149 = vmatpush1.bf16.msra.mxu0 0
    %150 = vmatprep.mubr.bf16.mxu0 0
    %151 = vmatmul.mubr.bf16.gmra.mrb[0].mxu0 %v116
    %v152 = vpop.f32.mrb[0].mxu0
    %v153 = vadd.f32 %v112, %v152
    %v154 = vpop.f32.mrb[0].mxu0
    %v155 = vadd.f32 %v112, %v154
    %v156 = vpop.f32.mrb[0].mxu0
    %v157 = vpop.f32.mrb[0].mxu0
    %158 = vdwg.mxu0
    %v159 = vadd.f32 %v153, %v28
    %v160 = vadd.f32 %v155, %v30
    %v163 = vcombine.low %v159, %v160
    %165 = vst [vmem:[#allocation2] sm:$0xff] %v163
    %s166 = scalar_lea.vmem %s0, 8
    %v167 = vld [vmem:[%s166] sm:$0xff]
    %v169 = vcombine.high %v167, %v167
    %v171 = vpack.c.bf16 %v167, %v167
    %v172 = vpack.c.bf16 %v169, %v169
    %v174 = vsel %vm53, %v171, 0
    %v177 = vsel %vm53, %v172, 0
    %179 = vmatprep.subr.bf16.mxu0 %v177
    %180 = vmatpush1.bf16.msra.mxu0 %v174
    %181 = vmatprep.subr.bf16.mxu0 0
    %182 = vmatpush1.bf16.msra.mxu0 0
    %183 = vmatprep.subr.bf16.mxu0 0
    %184 = vmatpush1.bf16.msra.mxu0 0
    %185 = vmatprep.subr.bf16.mxu0 0
    %186 = vmatpush1.bf16.msra.mxu0 0
    %187 = vmatprep.subr.bf16.mxu0 0
    %188 = vmatpush1.bf16.msra.mxu0 0
    %189 = vmatprep.subr.bf16.mxu0 0
    %190 = vmatpush1.bf16.msra.mxu0 0
    %191 = vmatprep.subr.bf16.mxu0 0
    %192 = vmatpush1.bf16.msra.mxu0 0
    %193 = vmatprep.subr.bf16.mxu0 0
    %194 = vmatpush1.bf16.msra.mxu0 0
    %195 = vmatprep.subr.bf16.mxu0 0
    %196 = vmatpush1.bf16.msra.mxu0 0
    %197 = vmatprep.subr.bf16.mxu0 0
    %198 = vmatpush1.bf16.msra.mxu0 0
    %199 = vmatprep.subr.bf16.mxu0 0
    %200 = vmatpush1.bf16.msra.mxu0 0
    %201 = vmatprep.subr.bf16.mxu0 0
    %202 = vmatpush1.bf16.msra.mxu0 0
    %203 = vmatprep.subr.bf16.mxu0 0
    %204 = vmatpush1.bf16.msra.mxu0 0
    %205 = vmatprep.subr.bf16.mxu0 0
    %206 = vmatpush1.bf16.msra.mxu0 0
    %207 = vmatprep.subr.bf16.mxu0 0
    %208 = vmatpush1.bf16.msra.mxu0 0
    %209 = vmatprep.subr.bf16.mxu0 0
    %210 = vmatpush1.bf16.msra.mxu0 0
    %211 = vmatprep.mubr.bf16.mxu0 0
    %212 = vmatmul.mubr.bf16.gmra.mrb[0].mxu0 %v51
    %v213 = vpop.f32.mrb[0].mxu0
    %v214 = vadd.f32 %v37, %v213
    %v215 = vpop.f32.mrb[0].mxu0
    %v216 = vadd.f32 %v37, %v215
    %v217 = vpop.f32.mrb[0].mxu0
    %v218 = vadd.f32 %v42, %v217
    %v219 = vpop.f32.mrb[0].mxu0
    %v220 = vadd.f32 %v42, %v219
    %221 = vdwg.mxu0
    %v222 = vmax.f32 %v214, 0.0
    %v223 = vmax.f32 %v216, 0.0
    %v224 = vmax.f32 %v218, 0.0
    %v225 = vmax.f32 %v220, 0.0
    %v226 = vpack.c.bf16 %v224, %v222
    %v227 = vpack.c.bf16 %v225, %v223
    %228 = vmatprep.subr.bf16.mxu0 %v227
    %229 = vmatpush1.bf16.msra.mxu0 %v226
    %230 = vmatprep.subr.bf16.mxu0 0
    %231 = vmatpush1.bf16.msra.mxu0 0
    %232 = vmatprep.subr.bf16.mxu0 0
    %233 = vmatpush1.bf16.msra.mxu0 0
    %234 = vmatprep.subr.bf16.mxu0 0
    %235 = vmatpush1.bf16.msra.mxu0 0
    %236 = vmatprep.subr.bf16.mxu0 0
    %237 = vmatpush1.bf16.msra.mxu0 0
    %238 = vmatprep.subr.bf16.mxu0 0
    %239 = vmatpush1.bf16.msra.mxu0 0
    %240 = vmatprep.subr.bf16.mxu0 0
    %241 = vmatpush1.bf16.msra.mxu0 0
    %242 = vmatprep.subr.bf16.mxu0 0
    %243 = vmatpush1.bf16.msra.mxu0 0
    %244 = vmatprep.subr.bf16.mxu0 0
    %245 = vmatpush1.bf16.msra.mxu0 0
    %246 = vmatprep.subr.bf16.mxu0 0
    %247 = vmatpush1.bf16.msra.mxu0 0
    %248 = vmatprep.subr.bf16.mxu0 0
    %249 = vmatpush1.bf16.msra.mxu0 0
    %250 = vmatprep.subr.bf16.mxu0 0
    %251 = vmatpush1.bf16.msra.mxu0 0
    %252 = vmatprep.subr.bf16.mxu0 0
    %253 = vmatpush1.bf16.msra.mxu0 0
    %254 = vmatprep.subr.bf16.mxu0 0
    %255 = vmatpush1.bf16.msra.mxu0 0
    %256 = vmatprep.subr.bf16.mxu0 0
    %257 = vmatpush1.bf16.msra.mxu0 0
    %258 = vmatprep.subr.bf16.mxu0 0
    %259 = vmatpush1.bf16.msra.mxu0 0
    %260 = vmatprep.mubr.bf16.mxu0 0
    %261 = vmatmul.mubr.bf16.gmra.mrb[0].mxu0 %v116
    %v262 = vpop.f32.mrb[0].mxu0
    %v263 = vadd.f32 %v112, %v262
    %v264 = vpop.f32.mrb[0].mxu0
    %v265 = vadd.f32 %v112, %v264
    %v266 = vpop.f32.mrb[0].mxu0
    %v267 = vpop.f32.mrb[0].mxu0
    %268 = vdwg.mxu0
    %v269 = vadd.f32 %v263, %v167
    %v270 = vadd.f32 %v265, %v169
    %v273 = vcombine.low %v269, %v270
    %s275 = scalar_lea.vmem [#allocation2], 8
    %276 = vst [vmem:[%s275] sm:$0xff] %v273
    // Predicated region
    $region22: #{tpu_custom_call.1} parent=1 // pred_check
      _
    $region23: #{tpu_custom_call.1} parent=1 // pred_check_branch
      %278 = sbr.rel (0) target = $region25
    $region24: #{tpu_custom_call.1} parent=1 // pred_region
      %s280 = ssub.s32 256, 256
      %281 = vsyncadd [#allocation3], %s280
      %s282 = sshll.u32 [#allocation2], 4
      %s283 = int_to_ptr.vmem [resolvable:$true] %s282
      %288 = dma.vmem_to_hbm [thread:$0]  %s283, 256, %s5, [#allocation3], 128, 128, 8
    $region25: #{tpu_custom_call.1} parent=1 // pred_fallthru
      _
    // Predicated region
    $region26: #{tpu_custom_call.1} parent=1 // pred_check
      _
    $region27: #{tpu_custom_call.1} parent=1 // pred_check_branch
      %290 = sbr.rel (0) target = $region29
    $region28: #{tpu_custom_call.1} parent=1 // pred_region
      %291 = dma.done [#allocation3], 256
    $region29: #{tpu_custom_call.1} parent=1 // pred_fallthru
      _
    %292 = vsyncpa [#allocation3], 1

</llo_original>
